<compile_context>
chip_gen: v7x
topology: tpu7x:2x2x1
jax: 0.10.0
libtpu: 0.0.40
codegen_flags: <defaults>
</compile_context>

<pallas_src>
import jax
import jax.numpy as jnp
from jax import lax
from jax.experimental import pallas as pl
from jax.experimental.pallas import tpu as pltpu

LANES = 128


def spu_transformer_kernel(b_ref, out_ref):
    """Elementwise hot path of SPUTransformer.forward (box=False, best_slope=False).

    b_ref:   (2, TM, 128)  row 0 = lower, row 1 = upper
    out_ref: (6, TM, 128)  rows = [bound_lo, bound_hi, slope_lo, slope_hi, shift_lo, shift_hi]
    """
    l = b_ref[0]                          # int_bounds[:, 0]
    u = b_ref[1]                          # int_bounds[:, 1]

    # shared sigmoid(-x): single EUP transcendental per element (2 total).
    s_l = lax.logistic(-l)
    s_u = lax.logistic(-u)

    l_pos = l >= 0.0
    u_pos = u >= 0.0
    v_l = jnp.where(l_pos, l * l - 0.5, s_l - 1.0)          # val_spu[:, 0]
    v_u = jnp.where(u_pos, u * u - 0.5, s_u - 1.0)          # val_spu[:, 1]
    t_l = jnp.where(l_pos, 2.0 * l, -s_l * (1.0 - s_l))     # tangent_slopes[:, 0]
    t_u = jnp.where(u_pos, 2.0 * u, -s_u * (1.0 - s_u))     # tangent_slopes[:, 1]

    neg = u < 0.0
    pos = l_pos
    cross = jnp.logical_not(jnp.logical_or(neg, pos))

    # Degenerate u == l inputs give Inf/NaN here exactly like the PyTorch
    # reference; those lanes are never selected downstream for valid intervals.
    all_slopes = (v_u - v_l) / (u - l)

    # On cross rows t_l < 0, so (all_slopes < t_l) already implies all_slopes < 0;
    # the reference's extra cross_ind_neg term is redundant.
    crossing = jnp.logical_and(cross, all_slopes < t_l)     # cross_ind_neg_crossing_spu

    # upper relaxation (slopes[:, 1], shifts[:, 1])
    upper_slope = jnp.where(crossing, t_l, all_slopes)
    upper_shift = v_l - upper_slope * l

    # For crossing rows, move the upper interval bound to the tangent/parabola
    # intersection.  The relevant root is >= 0, so spu / spu' reduce to the
    # polynomial branch (no extra transcendental).
    disc = upper_slope * upper_slope + 4.0 * (upper_shift + 0.5)
    new_u = 0.5 * (upper_slope + jnp.sqrt(jnp.maximum(disc, 0.0)))
    u2 = jnp.where(crossing, new_u, u)
    v_u2 = jnp.where(crossing, new_u * new_u - 0.5, v_u)
    t_u2 = jnp.where(crossing, 2.0 * new_u, t_u)

    # provisional lower slopes / shifts
    prov_lo = jnp.where(cross, (-0.5 - v_l) / (0.0 - l), t_l)   # prov_lower_slopes[:, 0]
    prov_hi = t_u2                                              # prov_lower_slopes[:, 1]
    sp_lo = v_l - prov_lo * l                                   # shifts_prov_lower_slopes[:, 0]
    sp_hi = v_u2 - prov_hi * u2                                 # shifts_prov_lower_slopes[:, 1]

    const_lower = jnp.where(cross, -0.5, v_l)                   # constant_lower_shifts

    # area heuristic (only selects WHICH sound lower relaxation is used)
    y_u = prov_lo * u2 + sp_lo                                  # y[:, 1]
    y_l = prov_hi * l + sp_hi                                   # y[:, 0]
    # exact divide kept: bit-compatible heuristic behaviour with the reference
    x = (const_lower - upper_shift) / upper_slope

    span = u2 - l
    a0 = 0.5 * jnp.abs(y_u - v_u2) * span
    a1 = 0.5 * jnp.abs(y_l - v_l) * span

    mask_hi = x >= (u2 - 1e-5)
    mask_lo = x <= (l + 1e-5)

    hi_val = 0.5 * jnp.abs(v_l - const_lower) * (x - l)
    lo_val = 0.5 * jnp.abs(v_u2 - const_lower) * (u2 - x)
    hi_cut = 0.5 * jnp.abs(v_u2 - const_lower) * (x - u2)
    lo_cut = 0.5 * jnp.abs(v_l - const_lower) * (l - x)

    # PyTorch applies the masked in-place updates sequentially; when BOTH masks
    # hold (x within 1e-5 of l and u2, i.e. a near-degenerate interval) the
    # cutoff ends up subtracted twice.  Collapsed to 3 selects, same semantics.
    a2 = jnp.where(
        mask_lo,
        lo_val - jnp.where(mask_hi, 2.0 * lo_cut, lo_cut),
        jnp.where(mask_hi, hi_val - hi_cut, 0.0))

    # output bounds: swap where the chord slope is negative, then fix cross lower bound
    ind_switched = all_slopes < 0.0
    out_l = jnp.where(ind_switched, v_u2, v_l)
    out_u = jnp.where(ind_switched, v_l, v_u2)
    out_l = jnp.where(cross, -0.5, out_l)

    # argmin over the 3 candidate areas (first-index tie-break, matching torch.argmin)
    min0 = jnp.logical_and(a0 <= a1, a0 <= a2)
    min1 = jnp.logical_and(jnp.logical_not(min0), a1 <= a2)

    lower_slope = jnp.where(min0, prov_lo, jnp.where(min1, prov_hi, 0.0))
    lower_shift = jnp.where(min0, sp_lo, jnp.where(min1, sp_hi, const_lower))

    # swap slope/shift columns for negative-interval rows
    out_ref[0] = out_l
    out_ref[1] = out_u
    out_ref[2] = jnp.where(neg, upper_slope, lower_slope)   # slopes[:, 0]
    out_ref[3] = jnp.where(neg, lower_slope, upper_slope)   # slopes[:, 1]
    out_ref[4] = jnp.where(neg, upper_shift, lower_shift)   # shifts[:, 0]
    out_ref[5] = jnp.where(neg, lower_shift, upper_shift)   # shifts[:, 1]


def _pick_tiling(n):
    """Return (R, TM): padded sublane rows and block rows, with TM | R.

    - rows padded only to a multiple of 8 per grid step (no 512-row rounding)
    - >= 2 (even) grid steps for non-tiny inputs so the "parallel" grid axis
      can shard across both v7x TensorCores
    - block rows capped at ~512: (2+6)*512*128*4 B * 2 buffers ~= 4 MiB VMEM,
      comfortably inside every generation's default scoped-VMEM limit.
    """
    r0 = -(-n // LANES)                      # ceil(n / 128) sublane rows
    r0 = max(8, -(-r0 // 8) * 8)             # round up to multiple of 8
    if r0 <= 16:
        return r0, r0                        # tiny: single grid step
    steps = max(2, -(-r0 // 512))
    steps += steps & 1                       # even step count balances 2 TCs
    tm = -(-r0 // (8 * steps)) * 8           # multiple of 8
    return steps * tm, tm


def _spu_pallas(lohi):
    """Run the kernel on a lane-dense (2, N) slab.

    Returns ((6, R*128) padded result slab, n_valid).  Rows of the slab:
    [bound_lo, bound_hi, slope_lo, slope_hi, shift_lo, shift_hi].
    """
    lohi = jnp.asarray(lohi, jnp.float32)    # single cast (no-op if already f32)
    n = lohi.shape[1]
    R, TM = _pick_tiling(n)
    total = R * LANES

    pad = total - n
    if pad:
        # edge-replicate the last real (l, u) pair: one op, padded lanes stay
        # finite, no extra constant-slab materialization.
        lohi = jnp.pad(lohi, ((0, 0), (0, pad)), mode="edge")
    x = lohi.reshape(2, R, LANES)

    out = pl.pallas_call(
        spu_transformer_kernel,
        grid=(R // TM,),
        in_specs=[pl.BlockSpec((2, TM, LANES), lambda i: (0, i, 0))],
        out_specs=pl.BlockSpec((6, TM, LANES), lambda i: (0, i, 0)),
        out_shape=jax.ShapeDtypeStruct((6, R, LANES), jnp.float32),
        compiler_params=pltpu.CompilerParams(
            dimension_semantics=("parallel",)),
    )(x)
    return out.reshape(6, total), n


def spu_transformer_forward_packed(lohi):
    """Packed pipeline entry point: (2, N) in -> (6, N) out, no transposes."""
    slab, n = _spu_pallas(lohi)
    return slab[:, :n]


def spu_transformer_forward(bounds, factor=None):
    """Module-compatible wrapper.

    bounds: (N, 2) float32 (column 0 = lower, column 1 = upper), as in PyTorch.
    Returns (new_bounds (N,2), slopes (N,2), shifts (N,2)); the PyTorch module
    returns new_bounds and stores slopes/shifts as attributes.  `factor` (the
    nn.Parameter) is only used when best_slope=True, so it is accepted but
    unused in this default configuration.
    """
    slab, n = _spu_pallas(jnp.asarray(bounds, jnp.float32).T)  # one transpose in
    out = slab[:, :n].T                                        # ONE transpose+slice out
    return out[:, 0:2], out[:, 2:4], out[:, 4:6]


def _reference_bounds(bounds):
    """Pure-jnp reference for the returned bounds (for the self-test)."""
    l = bounds[:, 0]
    u = bounds[:, 1]
    s_l = lax.logistic(-l)
    s_u = lax.logistic(-u)
    v_l = jnp.where(l >= 0, l * l - 0.5, s_l - 1.0)
    v_u = jnp.where(u >= 0, u * u - 0.5, s_u - 1.0)
    t_l = jnp.where(l >= 0, 2.0 * l, -s_l * (1.0 - s_l))
    neg = u < 0
    pos = l >= 0
    cross = jnp.logical_not(jnp.logical_or(neg, pos))
    all_slopes = (v_u - v_l) / (u - l)
    crossing = jnp.logical_and(cross, all_slopes < t_l)
    upper_slope = jnp.where(crossing, t_l, all_slopes)
    upper_shift = v_l - upper_slope * l
    disc = upper_slope * upper_slope + 4.0 * (upper_shift + 0.5)
    new_u = 0.5 * (upper_slope + jnp.sqrt(jnp.maximum(disc, 0.0)))
    v_u2 = jnp.where(crossing, new_u * new_u - 0.5, v_u)
    sw = all_slopes < 0
    lo = jnp.where(cross, -0.5, jnp.where(sw, v_u2, v_l))
    hi = jnp.where(sw, v_l, v_u2)
    return jnp.stack([lo, hi], axis=1)


# TODO(synk): the reference forward contains a dead per-row torch.linspace plotting
# loop and a back_sub() path gated on steps_backsub>0 / best_slope / box; with the
# default constructor args they do not affect the returned bounds and are omitted.

if __name__ == "__main__":
    key = jax.random.PRNGKey(0)
    N = 2500  # number of neurons in the preceding layer (last.weights[:, 0] size)

    k1, k2 = jax.random.split(key)
    a = jax.random.normal(k1, (N,), dtype=jnp.float32) * 1.5
    b = jax.random.normal(k2, (N,), dtype=jnp.float32) * 1.5
    lower = jnp.minimum(a, b)
    upper = jnp.maximum(a, b) + 1e-3  # ensure strictly lower < upper
    bounds = jnp.stack([lower, upper], axis=1)            # (N, 2), like PyTorch input

    # deterministic parameter init (matches __init__: zeros_like(last.weights[:, 0]))
    factor = jnp.zeros((N,), dtype=jnp.float32)           # unused (best_slope=False)

    new_bounds, slopes, shifts = spu_transformer_forward(bounds, factor)
    jax.block_until_ready((new_bounds, slopes, shifts))

    assert new_bounds.shape == (N, 2) and new_bounds.dtype == jnp.float32
    assert slopes.shape == (N, 2) and shifts.shape == (N, 2)
    assert bool(jnp.all(jnp.isfinite(new_bounds)))
    assert bool(jnp.all(jnp.isfinite(slopes)))
    assert bool(jnp.all(jnp.isfinite(shifts)))
    assert bool(jnp.all(new_bounds[:, 1] >= new_bounds[:, 0]))

    ref = _reference_bounds(bounds)
    assert bool(jnp.allclose(new_bounds, ref, rtol=1e-5, atol=1e-5))
    print("KERNEL_OK")
</pallas_src>

<mosaic_0001>
module attributes {stable_mosaic.version = 11 : i64} {
  func.func @spu_transformer_kernel(%arg0: i32, %arg1: memref<2x16x128xf32, #tpu.memory_space<vmem>>, %arg2: memref<6x16x128xf32, #tpu.memory_space<vmem>>) attributes {dimension_semantics = [#tpu.dimension_semantics<parallel>], iteration_bounds = array<i64: 2>, scalar_prefetch = 0 : i64, scratch_operands = 0 : i64, tpu.core_type = #tpu.core_type<tc>, window_params = [{transform_indices = @transform_0, window_bounds = array<i64: 2, 16, 128>}, {transform_indices = @transform_1, window_bounds = array<i64: 6, 16, 128>}]} {
    %c0 = arith.constant 0 : index
    %c0_0 = arith.constant 0 : index
    %c0_1 = arith.constant 0 : index
    %0 = vector.load %arg1[%c0, %c0_0, %c0_1] : memref<2x16x128xf32, #tpu.memory_space<vmem>>, vector<1x16x128xf32>
    %1 = vector.shape_cast %0 : vector<1x16x128xf32> to vector<16x128xf32>
    %c1 = arith.constant 1 : index
    %c0_2 = arith.constant 0 : index
    %c0_3 = arith.constant 0 : index
    %2 = vector.load %arg1[%c1, %c0_2, %c0_3] : memref<2x16x128xf32, #tpu.memory_space<vmem>>, vector<1x16x128xf32>
    %3 = vector.shape_cast %2 : vector<1x16x128xf32> to vector<16x128xf32>
    %cst = arith.constant 0.000000e+00 : f32
    %4 = vector.broadcast %cst : f32 to vector<16x128xf32>
    %5 = arith.subf %4, %1 : vector<16x128xf32>
    %6 = arith.negf %5 : vector<16x128xf32>
    %7 = math.exp %6 : vector<16x128xf32>
    %cst_4 = arith.constant 1.000000e+00 : f32
    %8 = vector.broadcast %cst_4 : f32 to vector<16x128xf32>
    %9 = arith.addf %8, %7 : vector<16x128xf32>
    %10 = arith.divf %8, %9 : vector<16x128xf32>
    %cst_5 = arith.constant 0.000000e+00 : f32
    %11 = vector.broadcast %cst_5 : f32 to vector<16x128xf32>
    %12 = arith.subf %11, %3 : vector<16x128xf32>
    %13 = arith.negf %12 : vector<16x128xf32>
    %14 = math.exp %13 : vector<16x128xf32>
    %cst_6 = arith.constant 1.000000e+00 : f32
    %15 = vector.broadcast %cst_6 : f32 to vector<16x128xf32>
    %16 = arith.addf %15, %14 : vector<16x128xf32>
    %17 = arith.divf %15, %16 : vector<16x128xf32>
    %cst_7 = arith.constant 0.000000e+00 : f32
    %18 = vector.broadcast %cst_7 : f32 to vector<16x128xf32>
    %19 = arith.cmpf oge, %1, %18 : vector<16x128xf32>
    %cst_8 = arith.constant 0.000000e+00 : f32
    %20 = vector.broadcast %cst_8 : f32 to vector<16x128xf32>
    %21 = arith.cmpf oge, %3, %20 : vector<16x128xf32>
    %22 = arith.mulf %1, %1 : vector<16x128xf32>
    %cst_9 = arith.constant 5.000000e-01 : f32
    %23 = vector.broadcast %cst_9 : f32 to vector<16x128xf32>
    %24 = arith.subf %22, %23 : vector<16x128xf32>
    %cst_10 = arith.constant 1.000000e+00 : f32
    %25 = vector.broadcast %cst_10 : f32 to vector<16x128xf32>
    %26 = arith.subf %10, %25 : vector<16x128xf32>
    %27 = arith.select %19, %24, %26 : vector<16x128xi1>, vector<16x128xf32>
    %28 = arith.mulf %3, %3 : vector<16x128xf32>
    %cst_11 = arith.constant 5.000000e-01 : f32
    %29 = vector.broadcast %cst_11 : f32 to vector<16x128xf32>
    %30 = arith.subf %28, %29 : vector<16x128xf32>
    %cst_12 = arith.constant 1.000000e+00 : f32
    %31 = vector.broadcast %cst_12 : f32 to vector<16x128xf32>
    %32 = arith.subf %17, %31 : vector<16x128xf32>
    %33 = arith.select %21, %30, %32 : vector<16x128xi1>, vector<16x128xf32>
    %cst_13 = arith.constant 2.000000e+00 : f32
    %34 = vector.broadcast %cst_13 : f32 to vector<16x128xf32>
    %35 = arith.mulf %34, %1 : vector<16x128xf32>
    %cst_14 = arith.constant 0.000000e+00 : f32
    %36 = vector.broadcast %cst_14 : f32 to vector<16x128xf32>
    %37 = arith.subf %36, %10 : vector<16x128xf32>
    %cst_15 = arith.constant 1.000000e+00 : f32
    %38 = vector.broadcast %cst_15 : f32 to vector<16x128xf32>
    %39 = arith.subf %38, %10 : vector<16x128xf32>
    %40 = arith.mulf %37, %39 : vector<16x128xf32>
    %41 = arith.select %19, %35, %40 : vector<16x128xi1>, vector<16x128xf32>
    %cst_16 = arith.constant 2.000000e+00 : f32
    %42 = vector.broadcast %cst_16 : f32 to vector<16x128xf32>
    %43 = arith.mulf %42, %3 : vector<16x128xf32>
    %cst_17 = arith.constant 0.000000e+00 : f32
    %44 = vector.broadcast %cst_17 : f32 to vector<16x128xf32>
    %45 = arith.subf %44, %17 : vector<16x128xf32>
    %cst_18 = arith.constant 1.000000e+00 : f32
    %46 = vector.broadcast %cst_18 : f32 to vector<16x128xf32>
    %47 = arith.subf %46, %17 : vector<16x128xf32>
    %48 = arith.mulf %45, %47 : vector<16x128xf32>
    %49 = arith.select %21, %43, %48 : vector<16x128xi1>, vector<16x128xf32>
    %cst_19 = arith.constant 0.000000e+00 : f32
    %50 = vector.broadcast %cst_19 : f32 to vector<16x128xf32>
    %51 = arith.cmpf olt, %3, %50 : vector<16x128xf32>
    %52 = arith.ori %51, %19 : vector<16x128xi1>
    %cst_20 = arith.constant dense<true> : vector<16x128xi1>
    %53 = arith.xori %52, %cst_20 : vector<16x128xi1>
    %54 = arith.subf %33, %27 : vector<16x128xf32>
    %55 = arith.subf %3, %1 : vector<16x128xf32>
    %56 = arith.divf %54, %55 : vector<16x128xf32>
    %57 = arith.cmpf olt, %56, %41 : vector<16x128xf32>
    %58 = arith.andi %53, %57 : vector<16x128xi1>
    %59 = arith.select %58, %41, %56 : vector<16x128xi1>, vector<16x128xf32>
    %60 = arith.mulf %59, %1 : vector<16x128xf32>
    %61 = arith.subf %27, %60 : vector<16x128xf32>
    %62 = arith.mulf %59, %59 : vector<16x128xf32>
    %cst_21 = arith.constant 5.000000e-01 : f32
    %63 = vector.broadcast %cst_21 : f32 to vector<16x128xf32>
    %64 = arith.addf %61, %63 : vector<16x128xf32>
    %cst_22 = arith.constant 4.000000e+00 : f32
    %65 = vector.broadcast %cst_22 : f32 to vector<16x128xf32>
    %66 = arith.mulf %65, %64 : vector<16x128xf32>
    %67 = arith.addf %62, %66 : vector<16x128xf32>
    %cst_23 = arith.constant 0.000000e+00 : f32
    %68 = vector.broadcast %cst_23 : f32 to vector<16x128xf32>
    %69 = arith.maximumf %67, %68 : vector<16x128xf32>
    %70 = math.sqrt %69 : vector<16x128xf32>
    %71 = arith.addf %59, %70 : vector<16x128xf32>
    %cst_24 = arith.constant 5.000000e-01 : f32
    %72 = vector.broadcast %cst_24 : f32 to vector<16x128xf32>
    %73 = arith.mulf %72, %71 : vector<16x128xf32>
    %74 = arith.select %58, %73, %3 : vector<16x128xi1>, vector<16x128xf32>
    %75 = arith.mulf %73, %73 : vector<16x128xf32>
    %cst_25 = arith.constant 5.000000e-01 : f32
    %76 = vector.broadcast %cst_25 : f32 to vector<16x128xf32>
    %77 = arith.subf %75, %76 : vector<16x128xf32>
    %78 = arith.select %58, %77, %33 : vector<16x128xi1>, vector<16x128xf32>
    %cst_26 = arith.constant 2.000000e+00 : f32
    %79 = vector.broadcast %cst_26 : f32 to vector<16x128xf32>
    %80 = arith.mulf %79, %73 : vector<16x128xf32>
    %81 = arith.select %58, %80, %49 : vector<16x128xi1>, vector<16x128xf32>
    %cst_27 = arith.constant -5.000000e-01 : f32
    %82 = vector.broadcast %cst_27 : f32 to vector<16x128xf32>
    %83 = arith.subf %82, %27 : vector<16x128xf32>
    %cst_28 = arith.constant 0.000000e+00 : f32
    %84 = vector.broadcast %cst_28 : f32 to vector<16x128xf32>
    %85 = arith.subf %84, %1 : vector<16x128xf32>
    %86 = arith.divf %83, %85 : vector<16x128xf32>
    %87 = arith.select %53, %86, %41 : vector<16x128xi1>, vector<16x128xf32>
    %88 = arith.mulf %87, %1 : vector<16x128xf32>
    %89 = arith.subf %27, %88 : vector<16x128xf32>
    %90 = arith.mulf %81, %74 : vector<16x128xf32>
    %91 = arith.subf %78, %90 : vector<16x128xf32>
    %cst_29 = arith.constant -5.000000e-01 : f32
    %92 = vector.broadcast %cst_29 : f32 to vector<16x128xf32>
    %93 = arith.select %53, %92, %27 : vector<16x128xi1>, vector<16x128xf32>
    %94 = arith.mulf %87, %74 : vector<16x128xf32>
    %95 = arith.addf %94, %89 : vector<16x128xf32>
    %96 = arith.mulf %81, %1 : vector<16x128xf32>
    %97 = arith.addf %96, %91 : vector<16x128xf32>
    %98 = arith.subf %93, %61 : vector<16x128xf32>
    %99 = arith.divf %98, %59 : vector<16x128xf32>
    %100 = arith.subf %74, %1 : vector<16x128xf32>
    %101 = arith.subf %95, %78 : vector<16x128xf32>
    %102 = math.absf %101 : vector<16x128xf32>
    %cst_30 = arith.constant 5.000000e-01 : f32
    %103 = vector.broadcast %cst_30 : f32 to vector<16x128xf32>
    %104 = arith.mulf %103, %102 : vector<16x128xf32>
    %105 = arith.mulf %104, %100 : vector<16x128xf32>
    %106 = arith.subf %97, %27 : vector<16x128xf32>
    %107 = math.absf %106 : vector<16x128xf32>
    %cst_31 = arith.constant 5.000000e-01 : f32
    %108 = vector.broadcast %cst_31 : f32 to vector<16x128xf32>
    %109 = arith.mulf %108, %107 : vector<16x128xf32>
    %110 = arith.mulf %109, %100 : vector<16x128xf32>
    %cst_32 = arith.constant 9.99999974E-6 : f32
    %111 = vector.broadcast %cst_32 : f32 to vector<16x128xf32>
    %112 = arith.subf %74, %111 : vector<16x128xf32>
    %113 = arith.cmpf oge, %99, %112 : vector<16x128xf32>
    %cst_33 = arith.constant 9.99999974E-6 : f32
    %114 = vector.broadcast %cst_33 : f32 to vector<16x128xf32>
    %115 = arith.addf %1, %114 : vector<16x128xf32>
    %116 = arith.cmpf ole, %99, %115 : vector<16x128xf32>
    %117 = arith.subf %27, %93 : vector<16x128xf32>
    %118 = math.absf %117 : vector<16x128xf32>
    %cst_34 = arith.constant 5.000000e-01 : f32
    %119 = vector.broadcast %cst_34 : f32 to vector<16x128xf32>
    %120 = arith.mulf %119, %118 : vector<16x128xf32>
    %121 = arith.subf %99, %1 : vector<16x128xf32>
    %122 = arith.mulf %120, %121 : vector<16x128xf32>
    %123 = arith.subf %78, %93 : vector<16x128xf32>
    %124 = math.absf %123 : vector<16x128xf32>
    %cst_35 = arith.constant 5.000000e-01 : f32
    %125 = vector.broadcast %cst_35 : f32 to vector<16x128xf32>
    %126 = arith.mulf %125, %124 : vector<16x128xf32>
    %127 = arith.subf %74, %99 : vector<16x128xf32>
    %128 = arith.mulf %126, %127 : vector<16x128xf32>
    %129 = arith.subf %78, %93 : vector<16x128xf32>
    %130 = math.absf %129 : vector<16x128xf32>
    %cst_36 = arith.constant 5.000000e-01 : f32
    %131 = vector.broadcast %cst_36 : f32 to vector<16x128xf32>
    %132 = arith.mulf %131, %130 : vector<16x128xf32>
    %133 = arith.subf %99, %74 : vector<16x128xf32>
    %134 = arith.mulf %132, %133 : vector<16x128xf32>
    %135 = arith.subf %27, %93 : vector<16x128xf32>
    %136 = math.absf %135 : vector<16x128xf32>
    %cst_37 = arith.constant 5.000000e-01 : f32
    %137 = vector.broadcast %cst_37 : f32 to vector<16x128xf32>
    %138 = arith.mulf %137, %136 : vector<16x128xf32>
    %139 = arith.subf %1, %99 : vector<16x128xf32>
    %140 = arith.mulf %138, %139 : vector<16x128xf32>
    %cst_38 = arith.constant 2.000000e+00 : f32
    %141 = vector.broadcast %cst_38 : f32 to vector<16x128xf32>
    %142 = arith.mulf %141, %140 : vector<16x128xf32>
    %143 = arith.select %113, %142, %140 : vector<16x128xi1>, vector<16x128xf32>
    %144 = arith.subf %128, %143 : vector<16x128xf32>
    %145 = arith.subf %122, %134 : vector<16x128xf32>
    %cst_39 = arith.constant 0.000000e+00 : f32
    %146 = vector.broadcast %cst_39 : f32 to vector<16x128xf32>
    %147 = arith.select %113, %145, %146 : vector<16x128xi1>, vector<16x128xf32>
    %148 = arith.select %116, %144, %147 : vector<16x128xi1>, vector<16x128xf32>
    %cst_40 = arith.constant 0.000000e+00 : f32
    %149 = vector.broadcast %cst_40 : f32 to vector<16x128xf32>
    %150 = arith.cmpf olt, %56, %149 : vector<16x128xf32>
    %151 = arith.select %150, %78, %27 : vector<16x128xi1>, vector<16x128xf32>
    %152 = arith.select %150, %27, %78 : vector<16x128xi1>, vector<16x128xf32>
    %cst_41 = arith.constant -5.000000e-01 : f32
    %153 = vector.broadcast %cst_41 : f32 to vector<16x128xf32>
    %154 = arith.select %53, %153, %151 : vector<16x128xi1>, vector<16x128xf32>
    %155 = arith.cmpf ole, %105, %110 : vector<16x128xf32>
    %156 = arith.cmpf ole, %105, %148 : vector<16x128xf32>
    %157 = arith.andi %155, %156 : vector<16x128xi1>
    %cst_42 = arith.constant dense<true> : vector<16x128xi1>
    %158 = arith.xori %157, %cst_42 : vector<16x128xi1>
    %159 = arith.cmpf ole, %110, %148 : vector<16x128xf32>
    %160 = arith.andi %158, %159 : vector<16x128xi1>
    %cst_43 = arith.constant 0.000000e+00 : f32
    %161 = vector.broadcast %cst_43 : f32 to vector<16x128xf32>
    %162 = arith.select %160, %81, %161 : vector<16x128xi1>, vector<16x128xf32>
    %163 = arith.select %157, %87, %162 : vector<16x128xi1>, vector<16x128xf32>
    %164 = arith.select %160, %91, %93 : vector<16x128xi1>, vector<16x128xf32>
    %165 = arith.select %157, %89, %164 : vector<16x128xi1>, vector<16x128xf32>
    %c0_44 = arith.constant 0 : index
    %c0_45 = arith.constant 0 : index
    %c0_46 = arith.constant 0 : index
    %166 = vector.load %arg2[%c0_44, %c0_45, %c0_46] : memref<6x16x128xf32, #tpu.memory_space<vmem>>, vector<1x16x128xf32>
    %167 = vector.shape_cast %166 : vector<1x16x128xf32> to vector<16x128xf32>
    %168 = vector.shape_cast %154 : vector<16x128xf32> to vector<1x16x128xf32>
    tpu.vector_store %arg2[%c0_44, %c0_45, %c0_46], %168 {strides = array<i32>} : memref<6x16x128xf32, #tpu.memory_space<vmem>>, vector<1x16x128xf32>,
    %c1_47 = arith.constant 1 : index
    %c0_48 = arith.constant 0 : index
    %c0_49 = arith.constant 0 : index
    %169 = vector.load %arg2[%c1_47, %c0_48, %c0_49] : memref<6x16x128xf32, #tpu.memory_space<vmem>>, vector<1x16x128xf32>
    %170 = vector.shape_cast %169 : vector<1x16x128xf32> to vector<16x128xf32>
    %171 = vector.shape_cast %152 : vector<16x128xf32> to vector<1x16x128xf32>
    tpu.vector_store %arg2[%c1_47, %c0_48, %c0_49], %171 {strides = array<i32>} : memref<6x16x128xf32, #tpu.memory_space<vmem>>, vector<1x16x128xf32>,
    %172 = arith.select %51, %59, %163 : vector<16x128xi1>, vector<16x128xf32>
    %c2 = arith.constant 2 : index
    %c0_50 = arith.constant 0 : index
    %c0_51 = arith.constant 0 : index
    %173 = vector.load %arg2[%c2, %c0_50, %c0_51] : memref<6x16x128xf32, #tpu.memory_space<vmem>>, vector<1x16x128xf32>
    %174 = vector.shape_cast %173 : vector<1x16x128xf32> to vector<16x128xf32>
    %175 = vector.shape_cast %172 : vector<16x128xf32> to vector<1x16x128xf32>
    tpu.vector_store %arg2[%c2, %c0_50, %c0_51], %175 {strides = array<i32>} : memref<6x16x128xf32, #tpu.memory_space<vmem>>, vector<1x16x128xf32>,
    %176 = arith.select %51, %163, %59 : vector<16x128xi1>, vector<16x128xf32>
    %c3 = arith.constant 3 : index
    %c0_52 = arith.constant 0 : index
    %c0_53 = arith.constant 0 : index
    %177 = vector.load %arg2[%c3, %c0_52, %c0_53] : memref<6x16x128xf32, #tpu.memory_space<vmem>>, vector<1x16x128xf32>
    %178 = vector.shape_cast %177 : vector<1x16x128xf32> to vector<16x128xf32>
    %179 = vector.shape_cast %176 : vector<16x128xf32> to vector<1x16x128xf32>
    tpu.vector_store %arg2[%c3, %c0_52, %c0_53], %179 {strides = array<i32>} : memref<6x16x128xf32, #tpu.memory_space<vmem>>, vector<1x16x128xf32>,
    %180 = arith.select %51, %61, %165 : vector<16x128xi1>, vector<16x128xf32>
    %c4 = arith.constant 4 : index
    %c0_54 = arith.constant 0 : index
    %c0_55 = arith.constant 0 : index
    %181 = vector.load %arg2[%c4, %c0_54, %c0_55] : memref<6x16x128xf32, #tpu.memory_space<vmem>>, vector<1x16x128xf32>
    %182 = vector.shape_cast %181 : vector<1x16x128xf32> to vector<16x128xf32>
    %183 = vector.shape_cast %180 : vector<16x128xf32> to vector<1x16x128xf32>
    tpu.vector_store %arg2[%c4, %c0_54, %c0_55], %183 {strides = array<i32>} : memref<6x16x128xf32, #tpu.memory_space<vmem>>, vector<1x16x128xf32>,
    %184 = arith.select %51, %165, %61 : vector<16x128xi1>, vector<16x128xf32>
    %c5 = arith.constant 5 : index
    %c0_56 = arith.constant 0 : index
    %c0_57 = arith.constant 0 : index
    %185 = vector.load %arg2[%c5, %c0_56, %c0_57] : memref<6x16x128xf32, #tpu.memory_space<vmem>>, vector<1x16x128xf32>
    %186 = vector.shape_cast %185 : vector<1x16x128xf32> to vector<16x128xf32>
    %187 = vector.shape_cast %184 : vector<16x128xf32> to vector<1x16x128xf32>
    tpu.vector_store %arg2[%c5, %c0_56, %c0_57], %187 {strides = array<i32>} : memref<6x16x128xf32, #tpu.memory_space<vmem>>, vector<1x16x128xf32>,
    return
  }
  func.func @transform_0(%arg0: i32) -> (i32, i32, i32) {
    %c0_i32 = arith.constant 0 : i32
    %c0_i32_0 = arith.constant 0 : i32
    %c0_i32_1 = arith.constant 0 : i32
    return %c0_i32, %arg0, %c0_i32_0 : i32, i32, i32
  }
  func.func @transform_1(%arg0: i32) -> (i32, i32, i32) {
    %c0_i32 = arith.constant 0 : i32
    %c0_i32_0 = arith.constant 0 : i32
    %c0_i32_1 = arith.constant 0 : i32
    return %c0_i32, %arg0, %c0_i32_0 : i32, i32, i32
  }
}

</mosaic_0001>

<llo_original>
// kernel: tpu_custom_call.1
$region0: #{tpu_custom_call.1}
  #allocation0 [shape = 'u32[]', space=smem, size = 0x4, offset = 0x4, fixed_abs, tag = 'smem constant byte address 0x4 - core index']
  #allocation1 [shape = 'u32[144,128]{1,0:T(1,128)}', space=vmem, size = 0x12000, scoped, tag = 'internal scratch']
  #allocation6 [shape = 's32[]', space=sflag, size = 0x4, offset = 0, fixed_abs, tag = 'sflag constant byte address 0x0 - dummy sync flag']
  #allocation8 [shape = 's32[]', space=sflag, size = 0x4, offset = 0, fixed_abs, tag = 'sflag constant byte address 0x0 - dummy sync flag']
  %s0 = inlined_call_operand.hbm [shape: f32[2,32,128], index: 0, kind: input, shape index: {}]
  %s1 = inlined_call_operand.hbm [shape: f32[6,32,128], index: 1, kind: output, shape index: {}]
  %s2 = sld [smem:[#allocation0]]
  $region41: #{tpu_custom_call.1} parent=0
    _
  %s4 = ssub.s32 1, %s2
  %s5 = scalar_select 0, %s4, %s2
  $region1: #{tpu_custom_call.1} parent=0
    #allocation2 [shape = 'u8[32768]{0}', space=vmem, size = 0x8000, scoped, tag = 'input window, operand 0']
    #allocation3 [shape = 's32[2]{0}', space=sflag, size = 0x8, scoped, tag = 'scoped memory for tpu_custom_call.1']
    #allocation4 [shape = 's32[2]{0}', space=sflag, size = 0x8, scoped, tag = 'scoped memory for tpu_custom_call.1']
    #allocation5 [shape = 'u8[98304]{0}', space=vmem, size = 0x18000, scoped, tag = 'output window, operand 0']
    %6 = vsyncpa [#allocation3], 0
    %s7 = scalar_lea.sflag [#allocation3], 1
    %8 = vsyncpa %s7, 0
    %9 = vsyncpa [#allocation4], 0
    %s10 = scalar_lea.sflag [#allocation4], 1
    %11 = vsyncpa %s10, 0
    loop: start=0, step=1, limit=4
    $region2: #{tpu_custom_call.1} parent=1 // loop_pre_header
      _
    $region3: #{tpu_custom_call.1} parent=1 // loop_header
      %s13 = sphi 0, %s17
      %p14 = scmp.ge.s32.totalorder %s13, 4
      %s23 = sphi 0, %s25
      %s26 = sphi 0, %s23
      %s27 = sphi 0, %s26
      %s43 = sphi 0, %s27
      %s49 = sphi 0, %s51
      %s52 = sphi 0, %s49
      %s53 = sphi 0, %s52
      %s69 = sphi 0, %s53
    $region4: #{tpu_custom_call.1} parent=1 // loop_header_branch
      %16 = sbr.rel (%p14) target = $region8
    $region5: #{tpu_custom_call.1} parent=1 // loop_body
      %s18 = ssub.s32 %s13, 1
      %s19 = ssub.s32 %s13, 2
      %s20 = sadd.s32 %s13, 1
      %s21 = ssub.s32 %s13, %s20
      %p22 = scmp.eq.s32.totalorder %s21, 0
      %s24 = sadd.s32 %s23, 1
      %s25 = scalar_select %p22, %s23, %s24
      %p28 = pneg %p22
      %p29 = scmp.eq.s32.totalorder %s13, 1
      %p30 = por %p28, %p29
      %p31 = scmp.ne.s32.totalorder %s23, %s26
      %p32 = scmp.eq.s32.totalorder %s13, 0
      %p33 = por %p31, %p32
      %p34 = scmp.ne.s32.totalorder %s23, %s26
      %p35 = scmp.eq.s32.totalorder %s18, 1
      %p36 = por %p34, %p35
      %p37 = scmp.ne.s32.totalorder %s26, %s27
      %p38 = scmp.eq.s32.totalorder %s18, 0
      %p39 = por %p37, %p38
      %p40 = scmp.ne.s32.totalorder %s26, %s27
      %p41 = scmp.eq.s32.totalorder %s19, 1
      %p42 = por %p40, %p41
      %p44 = scmp.ne.s32.totalorder %s27, %s43
      %p45 = scmp.eq.s32.totalorder %s19, 0
      %p46 = por %p44, %p45
      %s47 = ssub.s32 %s13, %s20
      %p48 = scmp.eq.s32.totalorder %s47, 0
      %s50 = sadd.s32 %s49, 1
      %s51 = scalar_select %p48, %s49, %s50
      %p54 = pneg %p48
      %p55 = scmp.eq.s32.totalorder %s13, 1
      %p56 = por %p54, %p55
      %p57 = scmp.ne.s32.totalorder %s49, %s52
      %p58 = scmp.eq.s32.totalorder %s13, 0
      %p59 = por %p57, %p58
      %p60 = scmp.ne.s32.totalorder %s49, %s52
      %p61 = scmp.eq.s32.totalorder %s18, 1
      %p62 = por %p60, %p61
      %p63 = scmp.ne.s32.totalorder %s52, %s53
      %p64 = scmp.eq.s32.totalorder %s18, 0
      %p65 = por %p63, %p64
      %p66 = scmp.ne.s32.totalorder %s52, %s53
      %p67 = scmp.eq.s32.totalorder %s19, 1
      %p68 = por %p66, %p67
      %p70 = scmp.ne.s32.totalorder %s53, %s69
      %p71 = scmp.eq.s32.totalorder %s19, 0
      %p72 = por %p70, %p71
      %p73 = scmp.le.s32.totalorder 1, %s13
      %p74 = scmp.lt.s32.totalorder %s13, 3
      %p75 = pnand %p73, %p74
      %p76 = pneg %p75
      // Predicated region
      $region9: #{tpu_custom_call.1} parent=5 // pred_check
        _
      $region10: #{tpu_custom_call.1} parent=5 // pred_check_branch
        %78 = sbr.rel (%p75) target = $region12
      $region11: #{tpu_custom_call.1} parent=5 // pred_region
        %s79 = ssub.s32 %s13, 1
      $region12: #{tpu_custom_call.1} parent=5 // pred_fallthru
        _
      %p80 = scmp.lt.s32.totalorder %s13, 2
      // Predicated region
      $region13: #{tpu_custom_call.1} parent=5 // pred_check
        %p81 = pneg %p80
      $region14: #{tpu_custom_call.1} parent=5 // pred_check_branch
        %83 = sbr.rel (%p81) target = $region16
      $region15: #{tpu_custom_call.1} parent=5 // pred_region
        // Predicated region
        $region17: #{tpu_custom_call.1} parent=15 // pred_check
          %p84 = pneg %p33
        $region18: #{tpu_custom_call.1} parent=15 // pred_check_branch
          %86 = sbr.rel (%p84) target = $region20
        $region19: #{tpu_custom_call.1} parent=15 // pred_region
          #allocation7 [shape = 'u32[6]{0}', space=smem, size = 0x18, scoped, tag = 'DMA stride descriptor']
          %s87 = sand.u32 %s23, 1
          %s88 = scalar_lea.sflag [#allocation3], %s87
          %s89 = sand.u32 %s23, 1
          %s90 = smul.addr %s89, 32
          %s91 = scalar_lea.vmem [#allocation2], %s90
          %s92 = smul.u32 2, %s13
          %s94 = ssub.s32 512, 512
          %95 = vsyncadd %s88, %s94
          %s96 = smul.addr %s92, 128
          %s97 = scalar_lea.hbm %s0, %s96
          %s99 = sshll.u32 1, 14
          %s100 = sxor.u32 4294967295, %s99
          %s102 = sld [smem:[#allocation0]]
          %s103 = sadd.s32 2, %s102
          %s105 = sshll.u32 7, 26
          %s106 = sxor.u32 4294967295, %s105
          %s107 = sand.u32 0, %s106
          %s108 = sshll.u32 %s103, 26
          %s109 = sor.u32 %s107, %s108
          %s110 = sshll.u32 %s91, 4
          %s111 = int_to_ptr.vmem [resolvable:$true] %s110
          %117 = sst [smem:[#allocation7]] 512
          %s118 = scalar_lea.smem [#allocation7], 1
          %119 = sst [smem:[%s118]] 256
          %s120 = scalar_lea.smem [#allocation7], 2
          %121 = sst [smem:[%s120]] 2
          %s122 = scalar_lea.smem [#allocation7], 3
          %123 = sst [smem:[%s122]] 128
          %s124 = scalar_lea.smem [#allocation7], 4
          %125 = sst [smem:[%s124]] 128
          %s126 = scalar_lea.smem [#allocation7], 5
          %127 = sst [smem:[%s126]] 8
          %129 = dma.general %s97, 512, %s111, %s88, [#allocation6], [#allocation7], %s109, 0
        $region20: #{tpu_custom_call.1} parent=15 // pred_fallthru
          _
      $region16: #{tpu_custom_call.1} parent=5 // pred_fallthru
        _
      %p130 = scmp.le.s32.totalorder 1, %s13
      %p131 = scmp.lt.s32.totalorder %s13, 3
      %p132 = pnand %p130, %p131
      %p133 = pneg %p132
      // Predicated region
      $region21: #{tpu_custom_call.1} parent=5 // pred_check
        _
      $region22: #{tpu_custom_call.1} parent=5 // pred_check_branch
        %135 = sbr.rel (%p132) target = $region24
      $region23: #{tpu_custom_call.1} parent=5 // pred_region
        %s136 = ssub.s32 %s13, 1
        %s137 = sand.u32 %s26, 1
        %s138 = scalar_lea.sflag [#allocation3], %s137
        %s139 = sand.u32 %s26, 1
        %s140 = smul.addr %s139, 32
        %s141 = scalar_lea.vmem [#allocation2], %s140
        // Predicated region
        $region25: #{tpu_custom_call.1} parent=23 // pred_check
          %p142 = pneg %p39
        $region26: #{tpu_custom_call.1} parent=23 // pred_check_branch
          %144 = sbr.rel (%p142) target = $region28
        $region27: #{tpu_custom_call.1} parent=23 // pred_region
          %145 = dma.done %s138, 512
        $region28: #{tpu_custom_call.1} parent=23 // pred_fallthru
          _
        %s146 = sand.u32 %s26, 1
        %s147 = scalar_lea.sflag [#allocation3], %s146
        %s148 = sand.u32 %s26, 1
        %s149 = smul.addr %s148, 32
        %s150 = scalar_lea.vmem [#allocation2], %s149
        %p151 = pneg %p39
        %p152 = pneg %p36
        %p153 = pneg %p65
        %p154 = pneg %p62
        %s155 = sand.u32 %s52, 1
        %s156 = scalar_lea.sflag [#allocation4], %s155
        %s157 = sand.u32 %s52, 1
        %s158 = smul.addr %s157, 96
        %s159 = scalar_lea.vmem [#allocation5], %s158
        %s160 = smul.u32 2, %s18
        %s161 = smul.u32 2, %s18
        %v162 = vld [vmem:[%s141] sm:$0xff]
        %v163 = vld [vmem:[%s141 + $0x8] sm:$0xff]
        %s164 = scalar_lea.vmem %s141, 16 [#allocation2]
        %v165 = vld [vmem:[%s164] sm:$0xff]
        %v166 = vld [vmem:[%s164 + $0x8] sm:$0xff]
        %v167 = vsub.f32 0.0, %v162
        %v168 = vsub.f32 0.0, %v163
        %v169 = vxor.u32 %v167, 2147483648
        %v170 = vxor.u32 %v168, 2147483648
        %v171 = vmul.f32 %v169, 1.442695
        %v172 = vpow.pop %v171
        %v173 = vmul.f32 %v170, 1.442695
        %v174 = vpow.pop %v173
        %v175 = vadd.f32 %v172, 1.0
        %v176 = vadd.f32 %v174, 1.0
        %v177 = vrcp.pop %v175
        %v178 = vmul.f32 1.0, %v177
        %v179 = vrcp.pop %v176
        %v180 = vmul.f32 1.0, %v179
        %v181 = vsub.f32 0.0, %v165
        %v182 = vsub.f32 0.0, %v166
        %v183 = vxor.u32 %v181, 2147483648
        %v184 = vxor.u32 %v182, 2147483648
        %v185 = vmul.f32 %v183, 1.442695
        %v186 = vpow.pop %v185
        %v187 = vmul.f32 %v184, 1.442695
        %v188 = vpow.pop %v187
        %v189 = vadd.f32 %v186, 1.0
        %v190 = vadd.f32 %v188, 1.0
        %v191 = vrcp.pop %v189
        %v192 = vmul.f32 1.0, %v191
        %v193 = vrcp.pop %v190
        %v194 = vmul.f32 1.0, %v193
        %vm195 = vcmp.ge.f32.partialorder %v162, 0.0
        %vm196 = vcmp.ge.f32.partialorder %v163, 0.0
        %vm197 = vcmp.ge.f32.partialorder %v165, 0.0
        %vm198 = vcmp.ge.f32.partialorder %v166, 0.0
        %v199 = vmul.f32 %v162, %v162
        %v200 = vmul.f32 %v163, %v163
        %v201 = vsub.f32 %v199, 0.5
        %v202 = vsub.f32 %v200, 0.5
        %v203 = vsub.f32 %v178, 1.0
        %v204 = vsub.f32 %v180, 1.0
        %v205 = vsel %vm195, %v201, %v203
        %v206 = vsel %vm196, %v202, %v204
        %v207 = vmul.f32 %v165, %v165
        %v208 = vmul.f32 %v166, %v166
        %v209 = vsub.f32 %v207, 0.5
        %v210 = vsub.f32 %v208, 0.5
        %v211 = vsub.f32 %v192, 1.0
        %v212 = vsub.f32 %v194, 1.0
        %v213 = vsel %vm197, %v209, %v211
        %v214 = vsel %vm198, %v210, %v212
        %v215 = vmul.f32 %v162, 2.0
        %v216 = vmul.f32 %v163, 2.0
        %v217 = vsub.f32 0.0, %v178
        %v218 = vsub.f32 0.0, %v180
        %v219 = vsub.f32 1.0, %v178
        %v220 = vsub.f32 1.0, %v180
        %v221 = vmul.f32 %v217, %v219
        %v222 = vmul.f32 %v218, %v220
        %v223 = vsel %vm195, %v215, %v221
        %v224 = vsel %vm196, %v216, %v222
        %v225 = vmul.f32 %v165, 2.0
        %v226 = vmul.f32 %v166, 2.0
        %v227 = vsub.f32 0.0, %v192
        %v228 = vsub.f32 0.0, %v194
        %v229 = vsub.f32 1.0, %v192
        %v230 = vsub.f32 1.0, %v194
        %v231 = vmul.f32 %v227, %v229
        %v232 = vmul.f32 %v228, %v230
        %v233 = vsel %vm197, %v225, %v231
        %v234 = vsel %vm198, %v226, %v232
        %vm235 = vcmp.lt.f32.partialorder %v165, 0.0
        %vm236 = vcmp.lt.f32.partialorder %v166, 0.0
        %vm237 = vmor %vm235, %vm195
        %vm238 = vmor %vm236, %vm196
        %vm239 = vmxor %vm237, 1
        %vm240 = vmxor %vm238, 1
        %v241 = vsub.f32 %v213, %v205
        %v242 = vsub.f32 %v214, %v206
        %v243 = vsub.f32 %v165, %v162
        %v244 = vsub.f32 %v166, %v163
        %v245 = vrcp.pop %v243
        %v246 = vmul.f32 %v241, %v245
        %v247 = vrcp.pop %v244
        %v248 = vmul.f32 %v242, %v247
        %vm249 = vcmp.lt.f32.partialorder %v246, %v223
        %vm250 = vcmp.lt.f32.partialorder %v248, %v224
        %vm251 = vmand %vm239, %vm249
        %vm252 = vmand %vm240, %vm250
        %v253 = vsel %vm251, %v223, %v246
        %v254 = vsel %vm252, %v224, %v248
        %v255 = vmul.f32 %v253, %v162
        %v256 = vmul.f32 %v254, %v163
        %v257 = vsub.f32 %v205, %v255
        %v258 = vsub.f32 %v206, %v256
        %v259 = vmul.f32 %v253, %v253
        %v260 = vmul.f32 %v254, %v254
        %v261 = vadd.f32 %v257, 0.5
        %v262 = vadd.f32 %v258, 0.5
        %v263 = vmul.f32 %v261, 4.0
        %v264 = vmul.f32 %v262, 4.0
        %v265 = vadd.f32 %v259, %v263
        %v266 = vadd.f32 %v260, %v264
        %v267 = vmax.f32 %v265, 0.0
        %v268 = vmax.f32 %v266, 0.0
        %v269 = vrsqrt.pop %v267
        %v270 = vmul.f32 %v267, %v269
        %vm271 = vcmp.eq.f32.partialorder %v267, inf
        %v272 = vsel %vm271, %v267, %v270
        %vm273 = vcmp.eq.f32.partialorder %v267, 0.0
        %v274 = vand.u32 %v267, 2147483648
        %v275 = vsel %vm273, %v274, %v272
        %v276 = vrsqrt.pop %v268
        %v277 = vmul.f32 %v268, %v276
        %vm278 = vcmp.eq.f32.partialorder %v268, inf
        %v279 = vsel %vm278, %v268, %v277
        %vm280 = vcmp.eq.f32.partialorder %v268, 0.0
        %v281 = vand.u32 %v268, 2147483648
        %v282 = vsel %vm280, %v281, %v279
        %v283 = vadd.f32 %v253, %v275
        %v284 = vadd.f32 %v254, %v282
        %v285 = vmul.f32 %v283, 0.5
        %v286 = vmul.f32 %v284, 0.5
        %v287 = vsel %vm251, %v285, %v165
        %v288 = vsel %vm252, %v286, %v166
        %v289 = vmul.f32 %v285, %v285
        %v290 = vmul.f32 %v286, %v286
        %v291 = vsub.f32 %v289, 0.5
        %v292 = vsub.f32 %v290, 0.5
        %v293 = vsel %vm251, %v291, %v213
        %v294 = vsel %vm252, %v292, %v214
        %v295 = vmul.f32 %v285, 2.0
        %v296 = vmul.f32 %v286, 2.0
        %v297 = vsel %vm251, %v295, %v233
        %v298 = vsel %vm252, %v296, %v234
        %v299 = vsub.f32 -0.5, %v205
        %v300 = vsub.f32 -0.5, %v206
        %v301 = vrcp.pop %v167
        %v302 = vmul.f32 %v299, %v301
        %v303 = vrcp.pop %v168
        %v304 = vmul.f32 %v300, %v303
        %v305 = vsel %vm239, %v302, %v223
        %v306 = vsel %vm240, %v304, %v224
        %v307 = vmul.f32 %v305, %v162
        %v308 = vmul.f32 %v306, %v163
        %v309 = vsub.f32 %v205, %v307
        %v310 = vsub.f32 %v206, %v308
        %v311 = vmul.f32 %v297, %v287
        %v312 = vmul.f32 %v298, %v288
        %v313 = vsub.f32 %v293, %v311
        %v314 = vsub.f32 %v294, %v312
        %v315 = vsel %vm239, -0.5, %v205
        %v316 = vsel %vm240, -0.5, %v206
        %v317 = vmul.f32 %v305, %v287
        %v318 = vmul.f32 %v306, %v288
        %v319 = vadd.f32 %v317, %v309
        %v320 = vadd.f32 %v318, %v310
        %v321 = vmul.f32 %v297, %v162
        %v322 = vmul.f32 %v298, %v163
        %v323 = vadd.f32 %v321, %v313
        %v324 = vadd.f32 %v322, %v314
        %v325 = vsub.f32 %v315, %v257
        %v326 = vsub.f32 %v316, %v258
        %v327 = vrcp.pop %v253
        %v328 = vmul.f32 %v325, %v327
        %v329 = vrcp.pop %v254
        %v330 = vmul.f32 %v326, %v329
        %v331 = vsub.f32 %v287, %v162
        %v332 = vsub.f32 %v288, %v163
        %v333 = vsub.f32 %v319, %v293
        %v334 = vsub.f32 %v320, %v294
        %v335 = vand.u32 2147483647, %v333
        %v336 = vand.u32 2147483647, %v334
        %v337 = vmul.f32 %v335, 0.5
        %v338 = vmul.f32 %v336, 0.5
        %v339 = vmul.f32 %v337, %v331
        %v340 = vmul.f32 %v338, %v332
        %v341 = vsub.f32 %v323, %v205
        %v342 = vsub.f32 %v324, %v206
        %v343 = vand.u32 2147483647, %v341
        %v344 = vand.u32 2147483647, %v342
        %v345 = vmul.f32 %v343, 0.5
        %v346 = vmul.f32 %v344, 0.5
        %v347 = vmul.f32 %v345, %v331
        %v348 = vmul.f32 %v346, %v332
        %v349 = vsub.f32 %v287, 1e-05
        %v350 = vsub.f32 %v288, 1e-05
        %vm351 = vcmp.ge.f32.partialorder %v328, %v349
        %vm352 = vcmp.ge.f32.partialorder %v330, %v350
        %v353 = vadd.f32 %v162, 1e-05
        %v354 = vadd.f32 %v163, 1e-05
        %vm355 = vcmp.le.f32.partialorder %v328, %v353
        %vm356 = vcmp.le.f32.partialorder %v330, %v354
        %v357 = vsub.f32 %v205, %v315
        %v358 = vsub.f32 %v206, %v316
        %v359 = vand.u32 2147483647, %v357
        %v360 = vand.u32 2147483647, %v358
        %v361 = vmul.f32 %v359, 0.5
        %v362 = vmul.f32 %v360, 0.5
        %v363 = vsub.f32 %v328, %v162
        %v364 = vsub.f32 %v330, %v163
        %v365 = vmul.f32 %v361, %v363
        %v366 = vmul.f32 %v362, %v364
        %v367 = vsub.f32 %v293, %v315
        %v368 = vsub.f32 %v294, %v316
        %v369 = vand.u32 2147483647, %v367
        %v370 = vand.u32 2147483647, %v368
        %v371 = vmul.f32 %v369, 0.5
        %v372 = vmul.f32 %v370, 0.5
        %v373 = vsub.f32 %v287, %v328
        %v374 = vsub.f32 %v288, %v330
        %v375 = vmul.f32 %v371, %v373
        %v376 = vmul.f32 %v372, %v374
        %v377 = vsub.f32 %v328, %v287
        %v378 = vsub.f32 %v330, %v288
        %v379 = vmul.f32 %v371, %v377
        %v380 = vmul.f32 %v372, %v378
        %v381 = vsub.f32 %v162, %v328
        %v382 = vsub.f32 %v163, %v330
        %v383 = vmul.f32 %v361, %v381
        %v384 = vmul.f32 %v362, %v382
        %v385 = vmul.f32 %v383, 2.0
        %v386 = vmul.f32 %v384, 2.0
        %v387 = vsel %vm351, %v385, %v383
        %v388 = vsel %vm352, %v386, %v384
        %v389 = vsub.f32 %v375, %v387
        %v390 = vsub.f32 %v376, %v388
        %v391 = vsub.f32 %v365, %v379
        %v392 = vsub.f32 %v366, %v380
        %v393 = vsel %vm351, %v391, 0.0
        %v394 = vsel %vm352, %v392, 0.0
        %v395 = vsel %vm355, %v389, %v393
        %v396 = vsel %vm356, %v390, %v394
        %vm397 = vcmp.lt.f32.partialorder %v246, 0.0
        %vm398 = vcmp.lt.f32.partialorder %v248, 0.0
        %v399 = vsel %vm397, %v293, %v205
        %v400 = vsel %vm398, %v294, %v206
        %v401 = vsel %vm397, %v205, %v293
        %v402 = vsel %vm398, %v206, %v294
        %v403 = vsel %vm239, -0.5, %v399
        %v404 = vsel %vm240, -0.5, %v400
        %vm405 = vcmp.le.f32.partialorder %v339, %v347
        %vm406 = vcmp.le.f32.partialorder %v340, %v348
        %vm407 = vcmp.le.f32.partialorder %v339, %v395
        %vm408 = vcmp.le.f32.partialorder %v340, %v396
        %vm409 = vmand %vm405, %vm407
        %vm410 = vmand %vm406, %vm408
        %vm411 = vmxor %vm409, 1
        %vm412 = vmxor %vm410, 1
        %vm413 = vcmp.le.f32.partialorder %v347, %v395
        %vm414 = vcmp.le.f32.partialorder %v348, %v396
        %vm415 = vmand %vm411, %vm413
        %vm416 = vmand %vm412, %vm414
        %v417 = vsel %vm415, %v297, 0.0
        %v418 = vsel %vm416, %v298, 0.0
        %v419 = vsel %vm409, %v305, %v417
        %v420 = vsel %vm410, %v306, %v418
        %v421 = vsel %vm415, %v313, %v315
        %v422 = vsel %vm416, %v314, %v316
        %v423 = vsel %vm409, %v309, %v421
        %v424 = vsel %vm410, %v310, %v422
        %425 = vst [vmem:[%s159] sm:$0xff] %v403
        %426 = vst [vmem:[%s159 + $0x8] sm:$0xff] %v404
        %s427 = scalar_lea.vmem %s159, 16 [#allocation5]
        %428 = vst [vmem:[%s427] sm:$0xff] %v401
        %429 = vst [vmem:[%s427 + $0x8] sm:$0xff] %v402
        %v430 = vsel %vm235, %v253, %v419
        %v431 = vsel %vm236, %v254, %v420
        %s432 = scalar_lea.vmem %s159, 32 [#allocation5]
        %433 = vst [vmem:[%s432] sm:$0xff] %v430
        %434 = vst [vmem:[%s432 + $0x8] sm:$0xff] %v431
        %v435 = vsel %vm235, %v419, %v253
        %v436 = vsel %vm236, %v420, %v254
        %s437 = scalar_lea.vmem %s159, 48 [#allocation5]
        %438 = vst [vmem:[%s437] sm:$0xff] %v435
        %439 = vst [vmem:[%s437 + $0x8] sm:$0xff] %v436
        %v440 = vsel %vm235, %v257, %v423
        %v441 = vsel %vm236, %v258, %v424
        %s442 = scalar_lea.vmem %s159, 64 [#allocation5]
        %443 = vst [vmem:[%s442] sm:$0xff] %v440
        %444 = vst [vmem:[%s442 + $0x8] sm:$0xff] %v441
        %v445 = vsel %vm235, %v423, %v257
        %v446 = vsel %vm236, %v424, %v258
        %s447 = scalar_lea.vmem %s159, 80 [#allocation5]
        %448 = vst [vmem:[%s447] sm:$0xff] %v445
        %449 = vst [vmem:[%s447 + $0x8] sm:$0xff] %v446
        %s450 = sand.u32 %s52, 1
        %s451 = scalar_lea.sflag [#allocation4], %s450
        %s452 = sand.u32 %s52, 1
        %s453 = smul.addr %s452, 96
        %s454 = scalar_lea.vmem [#allocation5], %s453
        // Predicated region
        $region29: #{tpu_custom_call.1} parent=23 // pred_check
          %p455 = pneg %p62
        $region30: #{tpu_custom_call.1} parent=23 // pred_check_branch
          %457 = sbr.rel (%p455) target = $region32
        $region31: #{tpu_custom_call.1} parent=23 // pred_region
          #allocation9 [shape = 'u32[6]{0}', space=smem, size = 0x18, scoped, tag = 'DMA stride descriptor']
          %s458 = smul.u32 2, %s18
          %s460 = ssub.s32 1536, 1536
          %461 = vsyncadd %s451, %s460
          %s462 = smul.addr %s458, 128
          %s463 = scalar_lea.hbm %s1, %s462
          %s465 = sshll.u32 1, 14
          %s466 = sxor.u32 4294967295, %s465
          %s469 = sshll.u32 7, 18
          %s470 = sxor.u32 4294967295, %s469
          %s471 = sand.u32 0, %s470
          %s473 = sor.u32 %s471, 0
          %s475 = sshll.u32 3, 24
          %s476 = sxor.u32 4294967295, %s475
          %s477 = sand.u32 %s473, %s476
          %s479 = sor.u32 %s477, 0
          %s480 = sshll.u32 %s454, 4
          %s481 = int_to_ptr.vmem [resolvable:$true] %s480
          %487 = sst [smem:[#allocation9]] 256
          %s488 = scalar_lea.smem [#allocation9], 1
          %489 = sst [smem:[%s488]] 512
          %s490 = scalar_lea.smem [#allocation9], 2
          %491 = sst [smem:[%s490]] 2
          %s492 = scalar_lea.smem [#allocation9], 3
          %493 = sst [smem:[%s492]] 128
          %s494 = scalar_lea.smem [#allocation9], 4
          %495 = sst [smem:[%s494]] 128
          %s496 = scalar_lea.smem [#allocation9], 5
          %497 = sst [smem:[%s496]] 8
          %499 = dma.general %s481, 1536, %s463, %s451, [#allocation8], [#allocation9], %s479, 0
        $region32: #{tpu_custom_call.1} parent=23 // pred_fallthru
          _
      $region24: #{tpu_custom_call.1} parent=5 // pred_fallthru
        _
      %p500 = scmp.le.s32.totalorder 2, %s13
      // Predicated region
      $region33: #{tpu_custom_call.1} parent=5 // pred_check
        %p501 = pneg %p500
      $region34: #{tpu_custom_call.1} parent=5 // pred_check_branch
        %503 = sbr.rel (%p501) target = $region36
      $region35: #{tpu_custom_call.1} parent=5 // pred_region
        %s504 = ssub.s32 %s13, 2
        // Predicated region
        $region37: #{tpu_custom_call.1} parent=35 // pred_check
          %p505 = pneg %p68
        $region38: #{tpu_custom_call.1} parent=35 // pred_check_branch
          %507 = sbr.rel (%p505) target = $region40
        $region39: #{tpu_custom_call.1} parent=35 // pred_region
          %s508 = sand.u32 %s53, 1
          %s509 = scalar_lea.sflag [#allocation4], %s508
          %s510 = sand.u32 %s53, 1
          %s511 = smul.addr %s510, 96
          %s512 = scalar_lea.vmem [#allocation5], %s511
          %513 = dma.done %s509, 1536
        $region40: #{tpu_custom_call.1} parent=35 // pred_fallthru
          _
      $region36: #{tpu_custom_call.1} parent=5 // pred_fallthru
        _
    $region6: #{tpu_custom_call.1} parent=1 // loop_footer
      %s17 = sadd.s32 1, %s13
    $region7: #{tpu_custom_call.1} parent=1 // loop_footer_branch
      %12 = sbr.rel target = $region3
    $region8: #{tpu_custom_call.1} parent=1 // loop_exit
      _
    %514 = vsyncpa [#allocation3], 1
    %s515 = scalar_lea.sflag [#allocation3], 1
    %516 = vsyncpa %s515, 1
    %517 = vsyncpa [#allocation4], 1
    %s518 = scalar_lea.sflag [#allocation4], 1
    %519 = vsyncpa %s518, 1

</llo_original>
